<compile_context>
chip_gen: v6e
topology: v6e:2x2x1
jax: 0.10.0
libtpu: 0.0.40
codegen_flags: <defaults>
</compile_context>

<pallas_src>
import jax
import jax.numpy as jnp
from jax import lax
from jax.experimental import pallas as pl
from jax.experimental.pallas import tpu as pltpu


def _pooler_kernel(x_ref, w_ref, b_ref, out_ref):
    # x_ref:   [B, H]   token-0 activations (resident across the N grid)
    # w_ref:   [TN, H]  weight tile in native nn.Linear [out, in] layout
    # b_ref:   [1, TN]  bias tile
    # out_ref: [B, TN]
    y = lax.dot_general(
        x_ref[...], w_ref[...],
        dimension_numbers=(((1,), (1,)), ((), ())),   # x @ w_tile.T on the MXU
        preferred_element_type=jnp.float32,
    )
    y = y + b_ref[...].astype(jnp.float32)
    out_ref[...] = jnp.tanh(y).astype(out_ref.dtype)


def _pick_tn(H, B, w_itemsize, x_itemsize, out_itemsize,
             vmem_budget=24 * 1024 * 1024):
    """Largest 128-multiple divisor of H whose tile footprint fits the VMEM
    budget; prefer >= 2 grid steps (v7x 2-TC split) when H allows."""
    cands = [d for d in range(128, H + 1, 128) if H % d == 0]
    if not cands:
        # Small / odd H: block equals the full array (satisfies (8,128) rule).
        return H

    def footprint(tn):
        return (2 * tn * H * w_itemsize          # double-buffered weight tiles
                + B * H * x_itemsize             # resident activations
                + 2 * tn * 4                     # bias tiles (f32 upper bound)
                + 2 * B * tn * out_itemsize)     # double-buffered output tiles

    fitting = [tn for tn in cands if footprint(tn) <= vmem_budget]
    if not fitting:
        fitting = [cands[0]]                     # smallest legal tile
    tn = max(fitting)
    if tn == H:
        # Prefer >= 2 N tiles so the "parallel" axis can feed both v7x cores.
        smaller = [t for t in fitting if t < H]
        if smaller:
            tn = max(smaller)
    return tn


def bert_pooler(hidden_states, weight, bias):
    """BertPooler forward.

    hidden_states: [B, S, H]; weight: [H, H] (PyTorch nn.Linear [out, in]);
    bias: [H]. Returns tanh(hidden_states[:, 0] @ weight.T + bias), shape [B, H].
    """
    B, S, H = hidden_states.shape
    assert weight.shape == (H, H)
    assert bias.shape == (H,)

    # Slice token 0 outside the kernel: only [B, H] ever reaches VMEM.
    # TODO(synk): could use a 3-D BlockSpec with a squeezed seq dim to skip
    # this tiny copy, but a size-1 sublane block may be rejected by Mosaic.
    x0 = hidden_states[:, 0, :]                    # [B, H]
    bias2d = bias.reshape(1, H)
    # TODO(synk): optionally cast `weight` to bf16 at load time for ~2x on the
    # weight stream; kept in its stored dtype here to preserve exact numerics.

    x_isz = jnp.dtype(x0.dtype).itemsize
    w_isz = jnp.dtype(weight.dtype).itemsize
    b_isz = jnp.dtype(bias.dtype).itemsize
    o_isz = jnp.dtype(hidden_states.dtype).itemsize

    TN = _pick_tn(H, B, w_isz, x_isz, o_isz)
    assert H % TN == 0, f"TN={TN} must divide H={H}"
    grid = (H // TN,)

    # VMEM limit sized from the actual footprint (headroom for pipeline
    # metadata), clamped to something portable across v5e/v6e/v7x.
    footprint = (2 * TN * H * w_isz + B * H * x_isz
                 + 2 * TN * b_isz + 2 * B * TN * o_isz)
    vmem_limit = min(max(int(footprint * 1.5) + (2 << 20), 16 << 20), 64 << 20)

    cost = pl.CostEstimate(
        flops=2 * B * H * H,
        transcendentals=B * H,
        bytes_accessed=(H * H * w_isz + B * H * x_isz
                        + H * b_isz + B * H * o_isz),
    )

    return pl.pallas_call(
        _pooler_kernel,
        out_shape=jax.ShapeDtypeStruct((B, H), hidden_states.dtype),
        grid_spec=pltpu.PrefetchScalarGridSpec(
            num_scalar_prefetch=0,
            grid=grid,
            in_specs=[
                # Activations: small [B, H], same block every step (resident).
                pl.BlockSpec((B, H), lambda j: (0, 0)),
                # Weight: stream [TN, H] row tiles in native [out, in] layout.
                pl.BlockSpec((TN, H), lambda j: (j, 0)),
                # Bias tile matching the weight's output-row tile.
                pl.BlockSpec((1, TN), lambda j: (0, j)),
            ],
            out_specs=pl.BlockSpec((B, TN), lambda j: (0, j)),
        ),
        compiler_params=pltpu.CompilerParams(
            dimension_semantics=("parallel",),
            vmem_limit_bytes=vmem_limit,
        ),
        cost_estimate=cost,
    )(x0, weight, bias2d)


if __name__ == "__main__":
    B, S, H = 2, 8, 32
    key = jax.random.PRNGKey(0)
    k_x, k_w, k_b = jax.random.split(key, 3)

    hidden_states = jax.random.normal(k_x, (B, S, H), dtype=jnp.float32)

    # Deterministic nn.Linear-style init: U(-1/sqrt(H), 1/sqrt(H))
    bound = 1.0 / (H ** 0.5)
    weight = jax.random.uniform(k_w, (H, H), dtype=jnp.float32,
                                minval=-bound, maxval=bound)   # [out, in]
    bias = jax.random.uniform(k_b, (H,), dtype=jnp.float32,
                              minval=-bound, maxval=bound)

    out = bert_pooler(hidden_states, weight, bias)
    out = jax.block_until_ready(out)

    # Reference check (plain JAX)
    ref = jnp.tanh(hidden_states[:, 0] @ weight.T + bias)
    assert out.shape == (B, H)
    assert jnp.allclose(out, ref, atol=1e-5, rtol=1e-5)

    print("KERNEL_OK")
</pallas_src>

<mosaic_0001>
module attributes {stable_mosaic.version = 11 : i64} {
  func.func @_pooler_kernel(%arg0: i32, %arg1: memref<2x32xf32, #tpu.memory_space<vmem>>, %arg2: memref<32x32xf32, #tpu.memory_space<vmem>>, %arg3: memref<1x32xf32, #tpu.memory_space<vmem>>, %arg4: memref<2x32xf32, #tpu.memory_space<vmem>>) attributes {dimension_semantics = [#tpu.dimension_semantics<parallel>], iteration_bounds = array<i64: 1>, scalar_prefetch = 0 : i64, scratch_operands = 0 : i64, tpu.core_type = #tpu.core_type<tc>, window_params = [{pipeline_mode = #tpu.pipeline_mode<synchronous>, transform_indices = @transform_0, window_bounds = array<i64: 2, 32>}, {transform_indices = @transform_1, window_bounds = array<i64: 32, 32>}, {transform_indices = @transform_2, window_bounds = array<i64: 1, 32>}, {transform_indices = @transform_3, window_bounds = array<i64: 2, 32>}]} {
    %c0 = arith.constant 0 : index
    %c0_0 = arith.constant 0 : index
    %0 = vector.load %arg1[%c0, %c0_0] : memref<2x32xf32, #tpu.memory_space<vmem>>, vector<2x32xf32>
    %c0_1 = arith.constant 0 : index
    %c0_2 = arith.constant 0 : index
    %1 = vector.load %arg2[%c0_1, %c0_2] : memref<32x32xf32, #tpu.memory_space<vmem>>, vector<32x32xf32>
    %cst = arith.constant dense<0.000000e+00> : vector<2x32xf32>
    %2 = tpu.matmul %0, %1, %cst {dimension_numbers = #tpu.dot_dimension_numbers<[1], [1], [0], [0], [0, 0, 1, 0], [], []>} : vector<2x32xf32>, vector<32x32xf32>, vector<2x32xf32> -> vector<2x32xf32>
    %c0_3 = arith.constant 0 : index
    %c0_4 = arith.constant 0 : index
    %3 = vector.load %arg3[%c0_3, %c0_4] : memref<1x32xf32, #tpu.memory_space<vmem>>, vector<1x32xf32>
    %4 = vector.broadcast %3 : vector<1x32xf32> to vector<2x32xf32>
    %5 = arith.addf %2, %4 : vector<2x32xf32>
    %6 = math.tanh %5 : vector<2x32xf32>
    %c0_5 = arith.constant 0 : index
    %c0_6 = arith.constant 0 : index
    %7 = vector.load %arg4[%c0_5, %c0_6] : memref<2x32xf32, #tpu.memory_space<vmem>>, vector<2x32xf32>
    tpu.vector_store %arg4[%c0_5, %c0_6], %6 {strides = array<i32>} : memref<2x32xf32, #tpu.memory_space<vmem>>, vector<2x32xf32>,
    return
  }
  func.func @transform_0(%arg0: i32) -> (i32, i32) {
    %c0_i32 = arith.constant 0 : i32
    %c0_i32_0 = arith.constant 0 : i32
    %c0_i32_1 = arith.constant 0 : i32
    return %c0_i32, %c0_i32_0 : i32, i32
  }
  func.func @transform_1(%arg0: i32) -> (i32, i32) {
    %c0_i32 = arith.constant 0 : i32
    %c0_i32_0 = arith.constant 0 : i32
    return %arg0, %c0_i32 : i32, i32
  }
  func.func @transform_2(%arg0: i32) -> (i32, i32) {
    %c0_i32 = arith.constant 0 : i32
    %c0_i32_0 = arith.constant 0 : i32
    return %c0_i32, %arg0 : i32, i32
  }
  func.func @transform_3(%arg0: i32) -> (i32, i32) {
    %c0_i32 = arith.constant 0 : i32
    %c0_i32_0 = arith.constant 0 : i32
    return %c0_i32, %arg0 : i32, i32
  }
}

</mosaic_0001>

<llo_original>
// kernel: tpu_custom_call.1
$region0: #{tpu_custom_call.1}
  #allocation0 [shape = 'u32[]', space=smem, size = 0x4, offset = 0x4, fixed_abs, tag = 'smem constant byte address 0x4 - core index']
  #allocation1 [shape = 'u32[144,128]{1,0:T(1,128)}', space=vmem, size = 0x12000, scoped, tag = 'internal scratch']
  %s0 = inlined_call_operand.hbm [shape: f32[2,32], index: 0, kind: input, shape index: {}]
  %s1 = inlined_call_operand.hbm [shape: f32[32,32], index: 1, kind: input, shape index: {}]
  %s2 = inlined_call_operand.vmem [shape: f32[1,32], index: 2, kind: input, shape index: {}]
  %s3 = inlined_call_operand.hbm [shape: f32[2,32], index: 3, kind: output, shape index: {}]
  %s4 = sld [smem:[#allocation0]]
  $region30: #{tpu_custom_call.1} parent=0
    _
  %s6 = ssub.s32 1, %s4
  %s7 = scalar_select 0, %s6, %s4
  $region1: #{tpu_custom_call.1} parent=0
    #allocation2 [shape = 'u8[1024]{0}', space=vmem, size = 0x400, scoped, tag = 'input window, operand 0, single buffered']
    #allocation3 [shape = 's32[1]{0}', space=sflag, size = 0x4, scoped, tag = 'scoped memory for tpu_custom_call.1']
    #allocation4 [shape = 's32[1]{0}', space=sflag, size = 0x4, scoped, tag = 'scoped memory for tpu_custom_call.1']
    #allocation5 [shape = 'u8[16384]{0}', space=vmem, size = 0x4000, scoped, tag = 'input window, operand 1, single buffered']
    #allocation6 [shape = 's32[1]{0}', space=sflag, size = 0x4, scoped, tag = 'scoped memory for tpu_custom_call.1']
    #allocation7 [shape = 'u8[1024]{0}', space=vmem, size = 0x400, scoped, tag = 'output window, operand 0, single buffered']
    %8 = vsyncpa [#allocation3], 0
    %9 = vsyncpa [#allocation6], 0
    %10 = vsyncpa [#allocation4], 0
    // Predicated region
    $region2: #{tpu_custom_call.1} parent=1 // pred_check
      _
    $region3: #{tpu_custom_call.1} parent=1 // pred_check_branch
      %12 = sbr.rel (0) target = $region5
    $region4: #{tpu_custom_call.1} parent=1 // pred_region
      %s14 = ssub.s32 32, 32
      %15 = vsyncadd [#allocation3], %s14
      %s17 = sshll.u32 [#allocation2], 4
      %s18 = int_to_ptr.vmem [resolvable:$true] %s17
      %20 = dma.hbm_to_vmem [thread:$0]  %s0, 32, %s18, [#allocation3]
    $region5: #{tpu_custom_call.1} parent=1 // pred_fallthru
      _
    // Predicated region
    $region6: #{tpu_custom_call.1} parent=1 // pred_check
      _
    $region7: #{tpu_custom_call.1} parent=1 // pred_check_branch
      %22 = sbr.rel (0) target = $region9
    $region8: #{tpu_custom_call.1} parent=1 // pred_region
      %s24 = ssub.s32 512, 512
      %25 = vsyncadd [#allocation6], %s24
      %s26 = sshll.u32 [#allocation5], 4
      %s27 = int_to_ptr.vmem [resolvable:$true] %s26
      %32 = dma.hbm_to_vmem [thread:$0]  %s1, 512, %s27, [#allocation6], 128, 128, 8
    $region9: #{tpu_custom_call.1} parent=1 // pred_fallthru
      _
    // Predicated region
    $region10: #{tpu_custom_call.1} parent=1 // pred_check
      _
    $region11: #{tpu_custom_call.1} parent=1 // pred_check_branch
      %34 = sbr.rel (0) target = $region13
    $region12: #{tpu_custom_call.1} parent=1 // pred_region
      _
    $region13: #{tpu_custom_call.1} parent=1 // pred_fallthru
      _
    // Predicated region
    $region14: #{tpu_custom_call.1} parent=1 // pred_check
      _
    $region15: #{tpu_custom_call.1} parent=1 // pred_check_branch
      %36 = sbr.rel (0) target = $region17
    $region16: #{tpu_custom_call.1} parent=1 // pred_region
      %37 = dma.done [#allocation3], 32
    $region17: #{tpu_custom_call.1} parent=1 // pred_fallthru
      _
    // Predicated region
    $region18: #{tpu_custom_call.1} parent=1 // pred_check
      _
    $region19: #{tpu_custom_call.1} parent=1 // pred_check_branch
      %39 = sbr.rel (0) target = $region21
    $region20: #{tpu_custom_call.1} parent=1 // pred_region
      %40 = dma.done [#allocation6], 512
    $region21: #{tpu_custom_call.1} parent=1 // pred_fallthru
      _
    %v41 = vld [vmem:[#allocation2] sm:$0x3]
    %v42 = vld [vmem:[#allocation5] sm:$0xff]
    %v43 = vld [vmem:[#allocation5 + $0x8] sm:$0xff]
    %v44 = vld [vmem:[#allocation5 + $0x10] sm:$0xff]
    %v45 = vld [vmem:[#allocation5 + $0x18] sm:$0xff]
    %v46 = vld [vmem:[%s2] sm:$0x1]
    %v48 = vlaneseq
    %v49 = vshrl.u32 %v48, 7
    %v50 = vsub.s32 0, %v49
    %v51 = vrot.slane %v46, %v50
    %vm53 = vcmask 261120
    %v55 = vsel %vm53, %v41, 0
    %v58 = vsel %vm53, %v42, 0
    %v61 = vsel %vm53, %v43, 0
    %v64 = vsel %vm53, %v44, 0
    %v67 = vsel %vm53, %v45, 0
    %69 = vmatprep.subr.mxu0 0.0
    %70 = vmatpush1.xpose.msra.mxu0 0.0
    %71 = vmatprep.subr.mxu0 0.0
    %72 = vmatpush1.xpose.msra.mxu0 0.0
    %73 = vmatprep.subr.mxu0 0.0
    %74 = vmatpush1.xpose.msra.mxu0 0.0
    %75 = vmatprep.subr.mxu0 0.0
    %76 = vmatpush1.xpose.msra.mxu0 0.0
    %77 = vmatprep.subr.mxu0 0.0
    %78 = vmatpush1.xpose.msra.mxu0 0.0
    %79 = vmatprep.subr.mxu0 0.0
    %80 = vmatpush1.xpose.msra.mxu0 0.0
    %81 = vmatprep.subr.mxu0 0.0
    %82 = vmatpush1.xpose.msra.mxu0 0.0
    %83 = vmatprep.subr.mxu0 0.0
    %84 = vmatpush1.xpose.msra.mxu0 0.0
    %85 = vmatprep.subr.mxu0 0.0
    %86 = vmatpush1.xpose.msra.mxu0 0.0
    %87 = vmatprep.subr.mxu0 0.0
    %88 = vmatpush1.xpose.msra.mxu0 0.0
    %89 = vmatprep.subr.mxu0 0.0
    %90 = vmatpush1.xpose.msra.mxu0 0.0
    %91 = vmatprep.subr.mxu0 0.0
    %92 = vmatpush1.xpose.msra.mxu0 0.0
    %93 = vmatprep.subr.mxu0 0.0
    %94 = vmatpush1.xpose.msra.mxu0 %v67
    %95 = vmatprep.subr.mxu0 0.0
    %96 = vmatpush1.xpose.msra.mxu0 %v64
    %97 = vmatprep.subr.mxu0 0.0
    %98 = vmatpush1.xpose.msra.mxu0 %v61
    %99 = vmatprep.subr.mxu0 0.0
    %100 = vmatpush1.xpose.msra.mxu0 %v58
    %101 = vmatprep.subr.mxu0 0.0
    %102 = vmatpush2.xpose.msra.mxu0 0.0
    %103 = vmatprep.subr.mxu0 0.0
    %104 = vmatpush2.xpose.msra.mxu0 0.0
    %105 = vmatprep.subr.mxu0 0.0
    %106 = vmatpush2.xpose.msra.mxu0 0.0
    %107 = vmatprep.subr.mxu0 0.0
    %108 = vmatpush2.xpose.msra.mxu0 0.0
    %109 = vmatprep.subr.mxu0 0.0
    %110 = vmatpush2.xpose.msra.mxu0 0.0
    %111 = vmatprep.subr.mxu0 0.0
    %112 = vmatpush2.xpose.msra.mxu0 0.0
    %113 = vmatprep.subr.mxu0 0.0
    %114 = vmatpush2.xpose.msra.mxu0 0.0
    %115 = vmatprep.subr.mxu0 0.0
    %116 = vmatpush2.xpose.msra.mxu0 0.0
    %117 = vmatprep.subr.mxu0 0.0
    %118 = vmatpush2.xpose.msra.mxu0 0.0
    %119 = vmatprep.subr.mxu0 0.0
    %120 = vmatpush2.xpose.msra.mxu0 0.0
    %121 = vmatprep.subr.mxu0 0.0
    %122 = vmatpush2.xpose.msra.mxu0 0.0
    %123 = vmatprep.subr.mxu0 0.0
    %124 = vmatpush2.xpose.msra.mxu0 0.0
    %125 = vmatprep.subr.mxu0 0.0
    %126 = vmatpush2.xpose.msra.mxu0 0.0
    %127 = vmatprep.subr.mxu0 0.0
    %128 = vmatpush2.xpose.msra.mxu0 0.0
    %129 = vmatprep.subr.mxu0 0.0
    %130 = vmatpush2.xpose.msra.mxu0 0.0
    %131 = vmatprep.subr.mxu0 0.0
    %132 = vmatpush2.xpose.msra.mxu0 0.0
    %133 = vmatprep.mubr.f32.mxu0 0.0
    %134 = vmatmul.mubr.f32.gmra.mxu0 %v55
    %v135 = vpop.f32.mrf.mxu0
    %v136 = vadd.f32 %v51, %v135
    %v137 = vpop.f32.mrf.mxu0
    %138 = vdwg.mxu0
    %v139 = vtanh.pop %v136
    %vm140 = vcmask 254976
    %141 = vst.msk [vmem:[#allocation7] sm:$0x3] %vm140, %v139
    // Predicated region
    $region22: #{tpu_custom_call.1} parent=1 // pred_check
      _
    $region23: #{tpu_custom_call.1} parent=1 // pred_check_branch
      %143 = sbr.rel (0) target = $region25
    $region24: #{tpu_custom_call.1} parent=1 // pred_region
      %s145 = ssub.s32 32, 32
      %146 = vsyncadd [#allocation4], %s145
      %s148 = sshll.u32 [#allocation7], 4
      %s149 = int_to_ptr.vmem [resolvable:$true] %s148
      %151 = dma.vmem_to_hbm [thread:$0]  %s149, 32, %s3, [#allocation4]
    $region25: #{tpu_custom_call.1} parent=1 // pred_fallthru
      _
    // Predicated region
    $region26: #{tpu_custom_call.1} parent=1 // pred_check
      _
    $region27: #{tpu_custom_call.1} parent=1 // pred_check_branch
      %153 = sbr.rel (0) target = $region29
    $region28: #{tpu_custom_call.1} parent=1 // pred_region
      %154 = dma.done [#allocation4], 32
    $region29: #{tpu_custom_call.1} parent=1 // pred_fallthru
      _
    %155 = vsyncpa [#allocation3], 1
    %156 = vsyncpa [#allocation6], 1
    %157 = vsyncpa [#allocation4], 1

</llo_original>
